<compile_context>
chip_gen: v5e
topology: v5e:2x2
jax: 0.10.0
libtpu: 0.0.40
codegen_flags: <defaults>
</compile_context>

<pallas_src>
import functools

import jax
import jax.numpy as jnp
from jax.experimental import pallas as pl
from jax.experimental.pallas import tpu as pltpu

_LANES = 128  # lane width of the packed output slab (full-vreg rows -> unmasked stores)


def attack_loss_kernel(pert_ref, mu_ref, scale_ref, adv_ref, mask_ref, out_ref, *, c):
    # norm_per_sample = sum_t perturbation^2                               [B, 1]
    pert = pert_ref[...]
    norm_ps = jnp.sum(pert * pert, axis=1, keepdims=True)

    # distance_per_sample = sum_{j in attack_idx} ((adv - mu) / scale)^2   [B, 1]
    # TODO(synk): mu[:, attack_idx] is a dynamic integer gather with no clean
    # in-kernel Pallas lowering; it is folded into the precomputed lane mask,
    # which is exactly equivalent for the summed loss.
    inv_scale = pl.reciprocal(scale_ref[...], approx=False)                # [B, 1]
    diff = (adv_ref[...] - mu_ref[...]) * inv_scale                        # [B, P]
    dist_ps = jnp.sum(mask_ref[...] * diff * diff, axis=1, keepdims=True)  # [B, 1]

    # loss_per_sample and the three scalar totals.
    loss_ps = norm_ps + c * dist_ps                                        # [B, 1]
    norm_tot = jnp.sum(norm_ps, axis=0, keepdims=True)                     # [1, 1]
    dist_tot = jnp.sum(dist_ps, axis=0, keepdims=True)                     # [1, 1]
    loss_tot = jnp.sum(loss_ps, axis=0, keepdims=True)                     # [1, 1]

    # Pack everything into one lane-dense slab -> single unmasked store.
    b = out_ref.shape[0]
    col = jax.lax.broadcasted_iota(jnp.int32, (b, _LANES), 1)
    slab = (jnp.where(col == 0, norm_ps, 0.0)
            + jnp.where(col == 1, dist_ps, 0.0)
            + jnp.where(col == 2, loss_ps, 0.0)
            + jnp.where(col == 3, norm_tot, 0.0)
            + jnp.where(col == 4, dist_tot, 0.0)
            + jnp.where(col == 5, loss_tot, 0.0))
    out_ref[...] = slab


def attack_loss_forward(perturbation, mu, scale, adv_target, attack_idx, c):
    B, _ = perturbation.shape
    _, P = mu.shape

    # Fold the attack_idx column gather into a selection mask (repeat-safe).
    idx = jnp.asarray(attack_idx, dtype=jnp.int32)
    mask = jnp.zeros((1, P), jnp.float32).at[0, idx].add(1.0)

    vmem = pl.BlockSpec(memory_space=pltpu.MemorySpace.VMEM)
    slab = pl.pallas_call(
        functools.partial(attack_loss_kernel, c=float(c)),
        out_shape=jax.ShapeDtypeStruct((B, _LANES), jnp.float32),
        in_specs=[vmem, vmem, vmem, vmem, vmem],
        out_specs=vmem,
    )(perturbation, mu, scale, adv_target, mask)

    norm_per_sample = slab[:, 0]
    distance_per_sample = slab[:, 1]
    loss_per_sample = slab[:, 2]
    norm = slab[0, 3]
    distance = slab[0, 4]
    loss = slab[0, 5]
    return norm_per_sample, distance_per_sample, loss_per_sample, norm, distance, loss


if __name__ == "__main__":
    # Small shapes consistent with the module: perturbation is the past-context
    # perturbation [B, T]; mu / adv_target are predictions [B, P]; scale is [B, 1].
    B, T, P = 8, 32, 16
    attack_idx = [0, 3, 7, 12]
    c = 0.1

    key = jax.random.PRNGKey(0)
    k_pert, k_mu, k_adv, k_scale = jax.random.split(key, 4)
    perturbation = 0.1 * jax.random.normal(k_pert, (B, T), dtype=jnp.float32)
    mu = jax.random.normal(k_mu, (B, P), dtype=jnp.float32)
    adv_target = jax.random.normal(k_adv, (B, P), dtype=jnp.float32)
    scale = jnp.abs(jax.random.normal(k_scale, (B, 1), dtype=jnp.float32)) + 1.0

    out = attack_loss_forward(perturbation, mu, scale, adv_target, attack_idx, c)
    jax.block_until_ready(out)
    norm_ps, dist_ps, loss_ps, norm, distance, loss = out

    # Pure-JAX reference mirroring the torch module exactly.
    idx = jnp.asarray(attack_idx)
    mu_sel = mu[:, idx]
    adv_sel = adv_target[:, idx]
    dist_t = (adv_sel / scale - mu_sel / scale) ** 2
    dist_ps_ref = dist_t.sum(axis=1)
    dist_ref = dist_ps_ref.sum()
    norm_t = perturbation ** 2
    norm_ps_ref = norm_t.sum(axis=1)
    norm_ref = norm_ps_ref.sum()
    loss_ps_ref = norm_ps_ref + c * dist_ps_ref
    loss_ref = loss_ps_ref.sum()

    assert jnp.allclose(norm_ps, norm_ps_ref, atol=1e-5, rtol=1e-5)
    assert jnp.allclose(dist_ps, dist_ps_ref, atol=1e-5, rtol=1e-5)
    assert jnp.allclose(loss_ps, loss_ps_ref, atol=1e-5, rtol=1e-5)
    assert jnp.allclose(norm, norm_ref, atol=1e-5, rtol=1e-5)
    assert jnp.allclose(distance, dist_ref, atol=1e-5, rtol=1e-5)
    assert jnp.allclose(loss, loss_ref, atol=1e-5, rtol=1e-5)

    print("KERNEL_OK")
</pallas_src>

<mosaic_0001>
module attributes {stable_mosaic.version = 11 : i64} {
  func.func @attack_loss_kernel(%arg0: memref<8x32xf32, #tpu.memory_space<vmem>>, %arg1: memref<8x16xf32, #tpu.memory_space<vmem>>, %arg2: memref<8x1xf32, #tpu.memory_space<vmem>>, %arg3: memref<8x16xf32, #tpu.memory_space<vmem>>, %arg4: memref<1x16xf32, #tpu.memory_space<vmem>>, %arg5: memref<8x128xf32, #tpu.memory_space<vmem>>) attributes {dimension_semantics = [], scalar_prefetch = 0 : i64, scratch_operands = 0 : i64, tpu.core_type = #tpu.core_type<tc>} {
    %c0 = arith.constant 0 : index
    %c0_0 = arith.constant 0 : index
    %0 = vector.load %arg0[%c0, %c0_0] : memref<8x32xf32, #tpu.memory_space<vmem>>, vector<8x32xf32>
    %1 = arith.mulf %0, %0 : vector<8x32xf32>
    %cst = arith.constant dense<0.000000e+00> : vector<8xf32>
    %2 = vector.multi_reduction <add>, %1, %cst [1] : vector<8x32xf32> to vector<8xf32>
    %3 = vector.shape_cast %2 : vector<8xf32> to vector<8x1xf32>
    %c0_1 = arith.constant 0 : index
    %c0_2 = arith.constant 0 : index
    %4 = vector.load %arg2[%c0_1, %c0_2] : memref<8x1xf32, #tpu.memory_space<vmem>>, vector<8x1xf32>
    %5 = tpu.reciprocal %4 : vector<8x1xf32> -> vector<8x1xf32>
    %c0_3 = arith.constant 0 : index
    %c0_4 = arith.constant 0 : index
    %6 = vector.load %arg3[%c0_3, %c0_4] : memref<8x16xf32, #tpu.memory_space<vmem>>, vector<8x16xf32>
    %c0_5 = arith.constant 0 : index
    %c0_6 = arith.constant 0 : index
    %7 = vector.load %arg1[%c0_5, %c0_6] : memref<8x16xf32, #tpu.memory_space<vmem>>, vector<8x16xf32>
    %8 = arith.subf %6, %7 : vector<8x16xf32>
    %9 = vector.broadcast %5 : vector<8x1xf32> to vector<8x16xf32>
    %10 = arith.mulf %8, %9 : vector<8x16xf32>
    %c0_7 = arith.constant 0 : index
    %c0_8 = arith.constant 0 : index
    %11 = vector.load %arg4[%c0_7, %c0_8] : memref<1x16xf32, #tpu.memory_space<vmem>>, vector<1x16xf32>
    %12 = vector.broadcast %11 : vector<1x16xf32> to vector<8x16xf32>
    %13 = arith.mulf %12, %10 : vector<8x16xf32>
    %14 = arith.mulf %13, %10 : vector<8x16xf32>
    %cst_9 = arith.constant dense<0.000000e+00> : vector<8xf32>
    %15 = vector.multi_reduction <add>, %14, %cst_9 [1] : vector<8x16xf32> to vector<8xf32>
    %16 = vector.shape_cast %15 : vector<8xf32> to vector<8x1xf32>
    %cst_10 = arith.constant 1.000000e-01 : f32
    %17 = vector.broadcast %cst_10 : f32 to vector<8x1xf32>
    %18 = arith.mulf %17, %16 : vector<8x1xf32>
    %19 = arith.addf %3, %18 : vector<8x1xf32>
    %cst_11 = arith.constant dense<0.000000e+00> : vector<1xf32>
    %20 = vector.multi_reduction <add>, %3, %cst_11 [0] : vector<8x1xf32> to vector<1xf32>
    %21 = vector.shape_cast %20 : vector<1xf32> to vector<1x1xf32>
    %cst_12 = arith.constant dense<0.000000e+00> : vector<1xf32>
    %22 = vector.multi_reduction <add>, %16, %cst_12 [0] : vector<8x1xf32> to vector<1xf32>
    %23 = vector.shape_cast %22 : vector<1xf32> to vector<1x1xf32>
    %cst_13 = arith.constant dense<0.000000e+00> : vector<1xf32>
    %24 = vector.multi_reduction <add>, %19, %cst_13 [0] : vector<8x1xf32> to vector<1xf32>
    %25 = vector.shape_cast %24 : vector<1xf32> to vector<1x1xf32>
    %26 = tpu.iota {dimensions = array<i32: 1>} : vector<8x128xi32>
    %c0_i32 = arith.constant 0 : i32
    %27 = vector.broadcast %c0_i32 : i32 to vector<8x128xi32>
    %28 = arith.cmpi eq, %26, %27 : vector<8x128xi32>
    %cst_14 = arith.constant 0.000000e+00 : f32
    %29 = vector.shape_cast %3 : vector<8x1xf32> to vector<8x1xf32>
    %30 = vector.broadcast %29 : vector<8x1xf32> to vector<8x128xf32>
    %31 = vector.broadcast %cst_14 : f32 to vector<8x128xf32>
    %32 = arith.select %28, %30, %31 : vector<8x128xi1>, vector<8x128xf32>
    %c1_i32 = arith.constant 1 : i32
    %33 = vector.broadcast %c1_i32 : i32 to vector<8x128xi32>
    %34 = arith.cmpi eq, %26, %33 : vector<8x128xi32>
    %cst_15 = arith.constant 0.000000e+00 : f32
    %35 = vector.shape_cast %16 : vector<8x1xf32> to vector<8x1xf32>
    %36 = vector.broadcast %35 : vector<8x1xf32> to vector<8x128xf32>
    %37 = vector.broadcast %cst_15 : f32 to vector<8x128xf32>
    %38 = arith.select %34, %36, %37 : vector<8x128xi1>, vector<8x128xf32>
    %39 = arith.addf %32, %38 : vector<8x128xf32>
    %c2_i32 = arith.constant 2 : i32
    %40 = vector.broadcast %c2_i32 : i32 to vector<8x128xi32>
    %41 = arith.cmpi eq, %26, %40 : vector<8x128xi32>
    %cst_16 = arith.constant 0.000000e+00 : f32
    %42 = vector.shape_cast %19 : vector<8x1xf32> to vector<8x1xf32>
    %43 = vector.broadcast %42 : vector<8x1xf32> to vector<8x128xf32>
    %44 = vector.broadcast %cst_16 : f32 to vector<8x128xf32>
    %45 = arith.select %41, %43, %44 : vector<8x128xi1>, vector<8x128xf32>
    %46 = arith.addf %39, %45 : vector<8x128xf32>
    %c3_i32 = arith.constant 3 : i32
    %47 = vector.broadcast %c3_i32 : i32 to vector<8x128xi32>
    %48 = arith.cmpi eq, %26, %47 : vector<8x128xi32>
    %cst_17 = arith.constant 0.000000e+00 : f32
    %49 = vector.shape_cast %21 : vector<1x1xf32> to vector<1x1xf32>
    %50 = vector.broadcast %49 : vector<1x1xf32> to vector<8x128xf32>
    %51 = vector.broadcast %cst_17 : f32 to vector<8x128xf32>
    %52 = arith.select %48, %50, %51 : vector<8x128xi1>, vector<8x128xf32>
    %53 = arith.addf %46, %52 : vector<8x128xf32>
    %c4_i32 = arith.constant 4 : i32
    %54 = vector.broadcast %c4_i32 : i32 to vector<8x128xi32>
    %55 = arith.cmpi eq, %26, %54 : vector<8x128xi32>
    %cst_18 = arith.constant 0.000000e+00 : f32
    %56 = vector.shape_cast %23 : vector<1x1xf32> to vector<1x1xf32>
    %57 = vector.broadcast %56 : vector<1x1xf32> to vector<8x128xf32>
    %58 = vector.broadcast %cst_18 : f32 to vector<8x128xf32>
    %59 = arith.select %55, %57, %58 : vector<8x128xi1>, vector<8x128xf32>
    %60 = arith.addf %53, %59 : vector<8x128xf32>
    %c5_i32 = arith.constant 5 : i32
    %61 = vector.broadcast %c5_i32 : i32 to vector<8x128xi32>
    %62 = arith.cmpi eq, %26, %61 : vector<8x128xi32>
    %cst_19 = arith.constant 0.000000e+00 : f32
    %63 = vector.shape_cast %25 : vector<1x1xf32> to vector<1x1xf32>
    %64 = vector.broadcast %63 : vector<1x1xf32> to vector<8x128xf32>
    %65 = vector.broadcast %cst_19 : f32 to vector<8x128xf32>
    %66 = arith.select %62, %64, %65 : vector<8x128xi1>, vector<8x128xf32>
    %67 = arith.addf %60, %66 : vector<8x128xf32>
    %c0_20 = arith.constant 0 : index
    %c0_21 = arith.constant 0 : index
    %68 = vector.load %arg5[%c0_20, %c0_21] : memref<8x128xf32, #tpu.memory_space<vmem>>, vector<8x128xf32>
    tpu.vector_store %arg5[%c0_20, %c0_21], %67 {strides = array<i32>} : memref<8x128xf32, #tpu.memory_space<vmem>>, vector<8x128xf32>,
    return
  }
}

</mosaic_0001>

<llo_original>
// kernel: tpu_custom_call.1
$region0: #{tpu_custom_call.1}
  #allocation0 [shape = 'u32[]', space=smem, size = 0x4, offset = 0x4, fixed_abs, tag = 'smem constant byte address 0x4 - core index']
  #allocation1 [shape = 'u32[72,128]{1,0:T(1,128)}', space=vmem, size = 0x9000, scoped, tag = 'internal scratch']
  %s0 = inlined_call_operand.vmem [shape: f32[8,32], index: 0, kind: input, shape index: {}]
  %s1 = inlined_call_operand.hbm [shape: f32[8,16], index: 1, kind: input, shape index: {}]
  %s2 = inlined_call_operand.vmem [shape: f32[8,1], index: 2, kind: input, shape index: {}]
  %s3 = inlined_call_operand.hbm [shape: f32[8,16], index: 3, kind: input, shape index: {}]
  %s4 = inlined_call_operand.vmem [shape: f32[1,16], index: 4, kind: input, shape index: {}]
  %s5 = inlined_call_operand.hbm [shape: f32[8,128], index: 5, kind: output, shape index: {}]
  %s6 = sld [smem:[#allocation0]]
  $region38: #{tpu_custom_call.1} parent=0
    _
  %s8 = ssub.s32 1, %s6
  %s9 = scalar_select 0, %s8, %s6
  $region1: #{tpu_custom_call.1} parent=0
    #allocation2 [shape = 'u8[4096]{0}', space=vmem, size = 0x1000, scoped, tag = 'input window, operand 1, single buffered']
    #allocation3 [shape = 's32[1]{0}', space=sflag, size = 0x4, scoped, tag = 'scoped memory for tpu_custom_call.1']
    #allocation4 [shape = 's32[1]{0}', space=sflag, size = 0x4, scoped, tag = 'scoped memory for tpu_custom_call.1']
    #allocation5 [shape = 'u8[4096]{0}', space=vmem, size = 0x1000, scoped, tag = 'input window, operand 3, single buffered']
    #allocation6 [shape = 's32[1]{0}', space=sflag, size = 0x4, scoped, tag = 'scoped memory for tpu_custom_call.1']
    #allocation7 [shape = 'u8[4096]{0}', space=vmem, size = 0x1000, scoped, tag = 'output window, operand 0, single buffered']
    %10 = vsyncpa [#allocation3], 0
    %11 = vsyncpa [#allocation6], 0
    %12 = vsyncpa [#allocation4], 0
    // Predicated region
    $region2: #{tpu_custom_call.1} parent=1 // pred_check
      _
    $region3: #{tpu_custom_call.1} parent=1 // pred_check_branch
      %14 = sbr.rel (0) target = $region5
    $region4: #{tpu_custom_call.1} parent=1 // pred_region
      _
    $region5: #{tpu_custom_call.1} parent=1 // pred_fallthru
      _
    // Predicated region
    $region6: #{tpu_custom_call.1} parent=1 // pred_check
      _
    $region7: #{tpu_custom_call.1} parent=1 // pred_check_branch
      %16 = sbr.rel (0) target = $region9
    $region8: #{tpu_custom_call.1} parent=1 // pred_region
      %18 = vsyncadd [#allocation3], 0
      %s20 = sshll.u32 %s1, 4
      %s21 = int_to_ptr.hbm [resolvable:$true] %s20
      %s22 = sshll.u32 [#allocation2], 4
      %s23 = int_to_ptr.vmem [resolvable:$true] %s22
      %25 = dma.hbm_to_vmem [thread:$0]  %s21, 128, %s23, [#allocation3]
    $region9: #{tpu_custom_call.1} parent=1 // pred_fallthru
      _
    // Predicated region
    $region10: #{tpu_custom_call.1} parent=1 // pred_check
      _
    $region11: #{tpu_custom_call.1} parent=1 // pred_check_branch
      %27 = sbr.rel (0) target = $region13
    $region12: #{tpu_custom_call.1} parent=1 // pred_region
      _
    $region13: #{tpu_custom_call.1} parent=1 // pred_fallthru
      _
    // Predicated region
    $region14: #{tpu_custom_call.1} parent=1 // pred_check
      _
    $region15: #{tpu_custom_call.1} parent=1 // pred_check_branch
      %29 = sbr.rel (0) target = $region17
    $region16: #{tpu_custom_call.1} parent=1 // pred_region
      %31 = vsyncadd [#allocation6], 0
      %s33 = sshll.u32 %s3, 4
      %s34 = int_to_ptr.hbm [resolvable:$true] %s33
      %s35 = sshll.u32 [#allocation5], 4
      %s36 = int_to_ptr.vmem [resolvable:$true] %s35
      %38 = dma.hbm_to_vmem [thread:$0]  %s34, 128, %s36, [#allocation6]
    $region17: #{tpu_custom_call.1} parent=1 // pred_fallthru
      _
    // Predicated region
    $region18: #{tpu_custom_call.1} parent=1 // pred_check
      _
    $region19: #{tpu_custom_call.1} parent=1 // pred_check_branch
      %40 = sbr.rel (0) target = $region21
    $region20: #{tpu_custom_call.1} parent=1 // pred_region
      _
    $region21: #{tpu_custom_call.1} parent=1 // pred_fallthru
      _
    // Predicated region
    $region22: #{tpu_custom_call.1} parent=1 // pred_check
      _
    $region23: #{tpu_custom_call.1} parent=1 // pred_check_branch
      %42 = sbr.rel (0) target = $region25
    $region24: #{tpu_custom_call.1} parent=1 // pred_region
      %44 = dma.done [#allocation3], 128
    $region25: #{tpu_custom_call.1} parent=1 // pred_fallthru
      _
    // Predicated region
    $region26: #{tpu_custom_call.1} parent=1 // pred_check
      _
    $region27: #{tpu_custom_call.1} parent=1 // pred_check_branch
      %46 = sbr.rel (0) target = $region29
    $region28: #{tpu_custom_call.1} parent=1 // pred_region
      %48 = dma.done [#allocation6], 128
    $region29: #{tpu_custom_call.1} parent=1 // pred_fallthru
      _
    %v49 = vld [vmem:[%s0] sm:$0xff]
    %v50 = vmul.f32 %v49, %v49
    %vm51 = vcmask 261120
    %v52 = vsel %vm51, %v50, 0.0
    %53 = vadd.xlane.f32.xlu0 %v52
    %v54 = vpop.xlane.xlu0 %53
    %v55 = vld [vmem:[%s2] sm:$0xff]
    %v56 = vrcp.pop %v55
    %v57 = vmul.f32 %v55, %v56
    %v58 = vsub.f32 1.0, %v57
    %v59 = vmul.f32 %v56, %v58
    %v60 = vadd.f32 %v56, %v59
    %vm61 = vweird.f32 %v55
    %vm62 = vweird.f32 %v56
    %vm63 = vmor %vm61, %vm62
    %v64 = vsel %vm63, %v56, %v60
    %v65 = vand.u32 2147483647, %v55
    %vm66 = vcmp.eq.f32.partialorder %v65, 8.507059e+37
    %v67 = vand.u32 %v55, 2147483648
    %v68 = vor.u32 1.1754944e-38, %v67
    %v69 = vsel %vm66, %v68, %v64
    %v70 = vld [vmem:[#allocation5] sm:$0xff]
    %v71 = vld [vmem:[#allocation2] sm:$0xff]
    %v72 = vsub.f32 %v70, %v71
    %74 = vset.pattern.permute.xlu0 0
    %75 = vperm.xlu0 %74, %v69
    %v76 = vpop.permute.xlu0 %75
    %v78 = vmul.f32 %v72, %v76
    %v79 = vld [vmem:[%s4] sm:$0x1]
    %v81 = vperm.slane %v79, 0
    %v83 = vmul.f32 %v81, %v78
    %v84 = vmul.f32 %v83, %v78
    %vm85 = vcmask 130048
    %v86 = vsel %vm85, %v84, 0.0
    %87 = vadd.xlane.f32.xlu0 %v86
    %v88 = vpop.xlane.xlu0 %87
    %v89 = vmul.f32 %v88, 0.1
    %v90 = vadd.f32 %v54, %v89
    %v91 = vrot.slane %v54, 4
    %v92 = vadd.f32 %v54, %v91
    %v93 = vrot.slane %v92, 2
    %v94 = vadd.f32 %v92, %v93
    %v95 = vrot.slane %v94, 1
    %v96 = vadd.f32 %v94, %v95
    %v97 = vrot.slane %v88, 4
    %v98 = vadd.f32 %v88, %v97
    %v99 = vrot.slane %v98, 2
    %v100 = vadd.f32 %v98, %v99
    %v101 = vrot.slane %v100, 1
    %v102 = vadd.f32 %v100, %v101
    %v103 = vrot.slane %v90, 4
    %v104 = vadd.f32 %v90, %v103
    %v105 = vrot.slane %v104, 2
    %v106 = vadd.f32 %v104, %v105
    %v107 = vrot.slane %v106, 1
    %v108 = vadd.f32 %v106, %v107
    %v109 = vlaneseq
    %v110 = vand.u32 %v109, 127
    %vm111 = vcmp.eq.s32.totalorder %v110, 0
    %v112 = vsel %vm111, %v54, 0.0
    %vm113 = vcmp.eq.s32.totalorder %v110, 1
    %v114 = vsel %vm113, %v88, 0.0
    %v115 = vadd.f32 %v112, %v114
    %vm116 = vcmp.eq.s32.totalorder %v110, 2
    %v117 = vsel %vm116, %v90, 0.0
    %v118 = vadd.f32 %v115, %v117
    %vm119 = vcmp.eq.s32.totalorder %v110, 3
    %v120 = vsel %vm119, %v96, 0.0
    %v121 = vadd.f32 %v118, %v120
    %vm122 = vcmp.eq.s32.totalorder %v110, 4
    %v123 = vsel %vm122, %v102, 0.0
    %v124 = vadd.f32 %v121, %v123
    %vm125 = vcmp.eq.s32.totalorder %v110, 5
    %v126 = vsel %vm125, %v108, 0.0
    %v127 = vadd.f32 %v124, %v126
    %128 = vst [vmem:[#allocation7] sm:$0xff] %v127
    // Predicated region
    $region30: #{tpu_custom_call.1} parent=1 // pred_check
      _
    $region31: #{tpu_custom_call.1} parent=1 // pred_check_branch
      %130 = sbr.rel (0) target = $region33
    $region32: #{tpu_custom_call.1} parent=1 // pred_region
      %132 = vsyncadd [#allocation4], 0
      %s134 = sshll.u32 [#allocation7], 4
      %s135 = int_to_ptr.vmem [resolvable:$true] %s134
      %s136 = sshll.u32 %s5, 4
      %s137 = int_to_ptr.hbm [resolvable:$true] %s136
      %139 = dma.vmem_to_hbm [thread:$0]  %s135, 128, %s137, [#allocation4]
    $region33: #{tpu_custom_call.1} parent=1 // pred_fallthru
      _
    // Predicated region
    $region34: #{tpu_custom_call.1} parent=1 // pred_check
      _
    $region35: #{tpu_custom_call.1} parent=1 // pred_check_branch
      %141 = sbr.rel (0) target = $region37
    $region36: #{tpu_custom_call.1} parent=1 // pred_region
      %143 = dma.done [#allocation4], 128
    $region37: #{tpu_custom_call.1} parent=1 // pred_fallthru
      _
    %144 = vsyncpa [#allocation3], 1
    %145 = vsyncpa [#allocation6], 1
    %146 = vsyncpa [#allocation4], 1

</llo_original>
